<compile_context>
chip_gen: v7x
topology: tpu7x:2x2x1
jax: 0.10.0
libtpu: 0.0.40
codegen_flags: <defaults>
</compile_context>

<pallas_src>
import functools

import jax
import jax.numpy as jnp
from jax.experimental import pallas as pl
from jax.experimental.pallas import tpu as pltpu


# ---------------------------------------------------------------------------
# constants / activation table (JAX equivalents of the torch ACT2FN dict)
# ---------------------------------------------------------------------------
_VMEM_LIMIT = 48 * 1024 * 1024     # < v7x 64 MiB physical; ample headroom on v5e/v6e
_MASK_VALUE = -10000.0             # matches the module's registered masked_bias

ACT2FN = {
    "relu": jax.nn.relu,
    "tanh": jnp.tanh,
    "linear": lambda x: x,
    "sigmoid": jax.nn.sigmoid,
    "gelu": functools.partial(jax.nn.gelu, approximate=False),   # F.gelu default (erf)
}


# ---------------------------------------------------------------------------
# helpers: tile picking + padding so blocks always divide the (padded) arrays
# ---------------------------------------------------------------------------
def _choose_tile(dim, target, unit):
    """Largest tile <= target that is a multiple of `unit` and divides `dim`;
    the full dim if it is already <= target; else `target` (caller pads)."""
    if dim <= target:
        return dim
    for cand in range(target, unit - 1, -unit):
        if dim % cand == 0:
            return cand
    return target


def _pad_axis(x, axis, multiple):
    size = x.shape[axis]
    pad = (-size) % multiple
    if pad == 0:
        return x
    widths = [(0, 0)] * x.ndim
    widths[axis] = (0, pad)
    return jnp.pad(x, widths)


def _pad2(x, m0, m1):
    return _pad_axis(_pad_axis(x, 0, m0), 1, m1)


# ---------------------------------------------------------------------------
# Kernel 1: tiled matmul  out = [residual +] act(x @ W + b)
#   grid = (M/tm, N/tn, K/tk), f32 accumulator scratch, K axis "arbitrary"
# ---------------------------------------------------------------------------
def _matmul_kernel(*refs, nk, act_name, has_residual):
    if has_residual:
        x_ref, w_ref, b_ref, r_ref, o_ref, acc_ref = refs
    else:
        x_ref, w_ref, b_ref, o_ref, acc_ref = refs
        r_ref = None

    k = pl.program_id(2)

    @pl.when(k == 0)
    def _():
        acc_ref[...] = jnp.zeros(acc_ref.shape, jnp.float32)

    acc_ref[...] += jnp.dot(x_ref[...], w_ref[...],
                            preferred_element_type=jnp.float32)

    @pl.when(k == nk - 1)
    def _():
        y = acc_ref[...] + b_ref[...].astype(jnp.float32)
        y = ACT2FN[act_name](y)
        if r_ref is not None:
            y = y + r_ref[...].astype(jnp.float32)
        o_ref[...] = y.astype(o_ref.dtype)


def _matmul(x, w, b, *, act="linear", residual=None, out_dtype=jnp.bfloat16,
            tm_target=256, tn_target=512, tk_target=512):
    """x: (M, K), w: (K, N), b: (N,) or (1, N), residual: (M, N) or None."""
    M, K = x.shape
    _, N = w.shape
    tm = _choose_tile(M, tm_target, 8)
    tn = _choose_tile(N, tn_target, 128)
    tk = _choose_tile(K, tk_target, 128)

    xp = _pad2(x, tm, tk).astype(jnp.bfloat16)
    wp = _pad2(w, tk, tn).astype(jnp.bfloat16)
    bp = _pad_axis(jnp.reshape(b, (1, -1)).astype(jnp.float32), 1, tn)
    Mp, Kp = xp.shape
    Np = wp.shape[1]

    inputs = [xp, wp, bp]
    in_specs = [
        pl.BlockSpec((tm, tk), lambda i, j, k: (i, k)),
        pl.BlockSpec((tk, tn), lambda i, j, k: (k, j)),
        pl.BlockSpec((1, tn), lambda i, j, k: (0, j)),
    ]
    has_res = residual is not None
    if has_res:
        inputs.append(_pad2(residual, tm, tn).astype(jnp.bfloat16))
        in_specs.append(pl.BlockSpec((tm, tn), lambda i, j, k: (i, j)))

    grid = (Mp // tm, Np // tn, Kp // tk)
    kernel = functools.partial(_matmul_kernel, nk=grid[2],
                               act_name=act, has_residual=has_res)
    out = pl.pallas_call(
        kernel,
        out_shape=jax.ShapeDtypeStruct((Mp, Np), out_dtype),
        grid=grid,
        in_specs=in_specs,
        out_specs=pl.BlockSpec((tm, tn), lambda i, j, k: (i, j)),
        scratch_shapes=[pltpu.VMEM((tm, tn), jnp.float32)],
        compiler_params=pltpu.CompilerParams(
            dimension_semantics=("parallel", "parallel", "arbitrary"),
            vmem_limit_bytes=_VMEM_LIMIT),
    )(*inputs)
    return out[:M, :N]


# ---------------------------------------------------------------------------
# Kernel 2: row-tiled LayerNorm (torch.nn.LayerNorm semantics: biased var)
# ---------------------------------------------------------------------------
def _layernorm_kernel(x_ref, g_ref, b_ref, o_ref, *, eps):
    x = x_ref[...].astype(jnp.float32)
    mu = jnp.mean(x, axis=-1, keepdims=True)
    var = jnp.mean(jnp.square(x - mu), axis=-1, keepdims=True)
    y = (x - mu) * jax.lax.rsqrt(var + eps)
    y = y * g_ref[...].astype(jnp.float32) + b_ref[...].astype(jnp.float32)
    o_ref[...] = y.astype(o_ref.dtype)


def _layernorm_op(x2d, g, b, eps, out_dtype=jnp.bfloat16, tm_target=256):
    M, H = x2d.shape
    tm = _choose_tile(M, tm_target, 8)
    xp = _pad_axis(x2d, 0, tm)
    Mp = xp.shape[0]
    out = pl.pallas_call(
        functools.partial(_layernorm_kernel, eps=eps),
        out_shape=jax.ShapeDtypeStruct((Mp, H), out_dtype),
        grid=(Mp // tm,),
        in_specs=[pl.BlockSpec((tm, H), lambda i: (i, 0)),
                  pl.BlockSpec((1, H), lambda i: (0, 0)),
                  pl.BlockSpec((1, H), lambda i: (0, 0))],
        out_specs=pl.BlockSpec((tm, H), lambda i: (i, 0)),
        compiler_params=pltpu.CompilerParams(
            dimension_semantics=("parallel",),
            vmem_limit_bytes=_VMEM_LIMIT),
    )(xp, g, b)
    return out[:M]


# ---------------------------------------------------------------------------
# Kernel 3: flash-style causal attention (online softmax), all heads batched
#   grid = (B, q_tiles, kv_tiles); never materializes (B,nh,S,S)
# ---------------------------------------------------------------------------
def _flash_attn_kernel(q_ref, k_ref, v_ref, o_ref, m_sc, l_sc, acc_sc,
                       *, scale, mask_value):
    i = pl.program_id(1)
    j = pl.program_id(2)
    tq = q_ref.shape[2]
    tkv = k_ref.shape[2]
    q_start = i * tq
    kv_start = j * tkv

    @pl.when(j == 0)
    def _():
        m_sc[...] = jnp.full(m_sc.shape, -jnp.inf, jnp.float32)
        l_sc[...] = jnp.zeros(l_sc.shape, jnp.float32)
        acc_sc[...] = jnp.zeros(acc_sc.shape, jnp.float32)

    # skip kv tiles that lie entirely above the causal diagonal
    @pl.when(kv_start <= q_start + tq - 1)
    def _():
        q = q_ref[0]                                   # (nh, tq, hd) bf16
        k = k_ref[0]
        v = v_ref[0]
        s = jnp.einsum("hqd,hkd->hqk", q, k,
                       preferred_element_type=jnp.float32) * scale
        qpos = q_start + jax.lax.broadcasted_iota(jnp.int32, (tq, tkv), 0)
        kpos = kv_start + jax.lax.broadcasted_iota(jnp.int32, (tq, tkv), 1)
        s = jnp.where((kpos <= qpos)[None, :, :], s, mask_value)

        m_prev = m_sc[...]
        m_new = jnp.maximum(m_prev, jnp.max(s, axis=-1, keepdims=True))
        alpha = jnp.exp(m_prev - m_new)
        p = jnp.exp(s - m_new)
        l_sc[...] = alpha * l_sc[...] + jnp.sum(p, axis=-1, keepdims=True)
        acc_sc[...] = alpha * acc_sc[...] + jnp.einsum(
            "hqk,hkd->hqd", p.astype(v.dtype), v,
            preferred_element_type=jnp.float32)
        m_sc[...] = m_new

    @pl.when(j == pl.num_programs(2) - 1)
    def _():
        inv_l = pl.reciprocal(l_sc[...], approx=True)
        o_ref[0] = (acc_sc[...] * inv_l).astype(o_ref.dtype)


def _flash_attention(q, k, v, *, scale, mask_value=_MASK_VALUE, t_target=256):
    """q, k, v: (B, nh, S, hd) bf16 -> context (B, nh, S, hd) bf16."""
    B, nh, S, hd = q.shape
    t = _choose_tile(S, t_target, 128)
    qp = _pad_axis(q, 2, t)
    kp = _pad_axis(k, 2, t)
    vp = _pad_axis(v, 2, t)
    Sp = qp.shape[2]
    grid = (B, Sp // t, Sp // t)

    out = pl.pallas_call(
        functools.partial(_flash_attn_kernel, scale=scale, mask_value=mask_value),
        out_shape=jax.ShapeDtypeStruct((B, nh, Sp, hd), jnp.bfloat16),
        grid=grid,
        in_specs=[pl.BlockSpec((1, nh, t, hd), lambda b, i, j: (b, 0, i, 0)),
                  pl.BlockSpec((1, nh, t, hd), lambda b, i, j: (b, 0, j, 0)),
                  pl.BlockSpec((1, nh, t, hd), lambda b, i, j: (b, 0, j, 0))],
        out_specs=pl.BlockSpec((1, nh, t, hd), lambda b, i, j: (b, 0, i, 0)),
        scratch_shapes=[pltpu.VMEM((nh, t, 1), jnp.float32),
                        pltpu.VMEM((nh, t, 1), jnp.float32),
                        pltpu.VMEM((nh, t, hd), jnp.float32)],
        compiler_params=pltpu.CompilerParams(
            dimension_semantics=("parallel", "parallel", "arbitrary"),
            vmem_limit_bytes=_VMEM_LIMIT),
    )(qp, kp, vp)
    return out[:, :, :S, :]


# ---------------------------------------------------------------------------
# Kernel 4 (optional path): full attention probabilities, lane-dense per
# (q_tile, S) block.  Only used when output_attentions=True.
# ---------------------------------------------------------------------------
def _attn_probs_kernel(q_ref, k_ref, o_ref, *, scale, mask_value):
    i = pl.program_id(2)
    tq = q_ref.shape[2]
    S = k_ref.shape[2]
    q = q_ref[0, 0]                                    # (tq, hd)
    k = k_ref[0, 0]                                    # (S, hd)
    s = jnp.dot(q, k.T, preferred_element_type=jnp.float32) * scale
    qpos = i * tq + jax.lax.broadcasted_iota(jnp.int32, (tq, S), 0)
    kpos = jax.lax.broadcasted_iota(jnp.int32, (tq, S), 1)
    s = jnp.where(kpos <= qpos, s, mask_value)
    o_ref[0, 0] = jax.nn.softmax(s, axis=-1).astype(o_ref.dtype)


def _attention_probs(q, k, *, scale, mask_value=_MASK_VALUE, tq_target=256):
    B, nh, S, hd = q.shape
    tq = _choose_tile(S, tq_target, 8)
    qp = _pad_axis(q, 2, tq)
    Sq = qp.shape[2]
    grid = (B, nh, Sq // tq)
    out = pl.pallas_call(
        functools.partial(_attn_probs_kernel, scale=scale, mask_value=mask_value),
        out_shape=jax.ShapeDtypeStruct((B, nh, Sq, S), jnp.float32),
        grid=grid,
        in_specs=[pl.BlockSpec((1, 1, tq, hd), lambda b, h, i: (b, h, i, 0)),
                  pl.BlockSpec((1, 1, S, hd), lambda b, h, i: (b, h, 0, 0))],
        out_specs=pl.BlockSpec((1, 1, tq, S), lambda b, h, i: (b, h, i, 0)),
        compiler_params=pltpu.CompilerParams(
            dimension_semantics=("parallel", "parallel", "parallel"),
            vmem_limit_bytes=_VMEM_LIMIT),
    )(qp, k)
    return out[:, :, :S, :]


# ---------------------------------------------------------------------------
# Model composition
# ---------------------------------------------------------------------------
def transformer_block(hidden, p, config, output_attentions):
    B, S, H = hidden.shape
    nh = config["num_attention_heads"]
    hd = H // nh
    eps = config["layer_norm_epsilon"]
    scale = (1.0 / float(hd) ** 0.5) if config["scale_attn_weights"] else 1.0

    x2d = hidden.reshape(B * S, H)

    # ln_1 + c_attn (fused qkv projection)
    h1 = _layernorm_op(x2d, p["ln1_g"], p["ln1_b"], eps)
    qkv = _matmul(h1, p["attn_w"], p["attn_b"])            # (B*S, 3H) bf16
    qkv = qkv.reshape(B, S, 3, nh, hd)
    q = jnp.transpose(qkv[:, :, 0], (0, 2, 1, 3))          # (B, nh, S, hd)
    k = jnp.transpose(qkv[:, :, 1], (0, 2, 1, 3))
    v = jnp.transpose(qkv[:, :, 2], (0, 2, 1, 3))

    # causal attention (flash) + merge heads (wrapper transpose, lane-dense H)
    ctx = _flash_attention(q, k, v, scale=scale)           # (B, nh, S, hd)
    ctx2d = jnp.transpose(ctx, (0, 2, 1, 3)).reshape(B * S, H)

    # c_proj + residual 1
    x2 = _matmul(ctx2d, p["attn_proj_w"], p["attn_proj_b"], residual=x2d)

    # ln_2 + MLP + residual 2
    h2 = _layernorm_op(x2, p["ln2_g"], p["ln2_b"], eps)
    fc = _matmul(h2, p["fc_w"], p["fc_b"], act=config["activation_function"])
    out2d = _matmul(fc, p["mlp_proj_w"], p["mlp_proj_b"], residual=x2)

    attn_probs = None
    if output_attentions:
        attn_probs = _attention_probs(q, k, scale=scale)

    return out2d.reshape(B, S, H), attn_probs


def final_ln_and_lm_head(hidden, params, config):
    B, S, H = hidden.shape
    eps = config["layer_norm_epsilon"]
    V = params["lm_head_w"].shape[1]
    h2d = _layernorm_op(hidden.reshape(B * S, H), params["lnf_g"],
                        params["lnf_b"], eps, out_dtype=jnp.float32)
    zero_bias = jnp.zeros((1, V), jnp.float32)              # lm_head has no bias
    logits = _matmul(h2d, params["lm_head_w"], zero_bias,
                     out_dtype=jnp.float32, tn_target=1024)
    return h2d.reshape(B, S, H), logits.reshape(B, S, V)


def _masked_ce_loss(logits, labels, pad_id):
    # glue: CrossEntropyLoss(reduction='none') + the module's masking scheme
    shift_logits = logits[:, :-1, :]
    shift_labels = labels[:, 1:]
    logprobs = jax.nn.log_softmax(shift_logits, axis=-1)
    per_token = -jnp.take_along_axis(logprobs, shift_labels[..., None], axis=-1)[..., 0]
    mask = (shift_labels != pad_id).astype(jnp.float32)
    mask = jnp.roll(mask, shift=1, axis=1)
    mask = mask.at[:, 0].set(1.0)
    per_token = per_token * mask
    seq_loss = per_token.sum(axis=1) / mask.sum(axis=1)
    return seq_loss.mean()


def lm_head_forward(params, input_ids, labels=None, PAD_ID=None, config=None,
                    output_attentions=True):
    B, S = input_ids.shape
    # embeddings (gather) -- glue in plain JAX
    inputs_embeds = jnp.take(params["wte"], input_ids, axis=0)           # (B, S, H)
    position_embeds = jnp.take(params["wpe"], jnp.arange(S, dtype=jnp.int32),
                               axis=0)[None, :, :]
    hidden = (inputs_embeds + position_embeds).astype(jnp.bfloat16)      # drop(p=0)

    all_hidden_states = ()
    all_self_attentions = ()
    for block_params in params["blocks"]:
        all_hidden_states = all_hidden_states + (hidden,)
        hidden, attn = transformer_block(hidden, block_params, config,
                                         output_attentions)
        if attn is not None:
            all_self_attentions = all_self_attentions + (attn,)

    last_hidden, lm_logits = final_ln_and_lm_head(hidden, params, config)
    all_hidden_states = all_hidden_states + (last_hidden,)

    loss = None
    if labels is not None:
        loss = _masked_ce_loss(lm_logits, labels, PAD_ID)

    return {
        "loss": loss,
        "logits": lm_logits,
        "past_key_values": None,           # TODO(synk): use_cache path not implemented
        "hidden_states": all_hidden_states,
        "attentions": all_self_attentions,
        "cross_attentions": (),
    }


# ---------------------------------------------------------------------------
# deterministic synthetic parameter init (shapes from the module's __init__)
# ---------------------------------------------------------------------------
def init_params(key, config):
    H = config["hidden_size"]
    V = config["vocab_size"]
    P = config["max_position_embeddings"]
    inner = config["n_inner"] if config["n_inner"] is not None else 4 * H
    L = config["num_hidden_layers"]

    keys = jax.random.split(key, 3 + L)

    def normal(k, shape, std=0.02):
        return jax.random.normal(k, shape, dtype=jnp.float32) * std

    params = {
        "wte": normal(keys[0], (V, H)),
        "wpe": normal(keys[1], (P, H)),
        "lnf_g": jnp.ones((1, H), jnp.float32),
        "lnf_b": jnp.zeros((1, H), jnp.float32),
        "lm_head_w": normal(keys[2], (H, V)),   # nn.Linear weight stored transposed
        "blocks": [],
    }
    for li in range(L):
        lk = jax.random.split(keys[3 + li], 4)
        params["blocks"].append({
            "ln1_g": jnp.ones((1, H), jnp.float32),
            "ln1_b": jnp.zeros((1, H), jnp.float32),
            "attn_w": normal(lk[0], (H, 3 * H)),       # c_attn: (nx, nf)
            "attn_b": jnp.zeros((1, 3 * H), jnp.float32),
            "attn_proj_w": normal(lk[1], (H, H)),      # c_proj
            "attn_proj_b": jnp.zeros((1, H), jnp.float32),
            "ln2_g": jnp.ones((1, H), jnp.float32),
            "ln2_b": jnp.zeros((1, H), jnp.float32),
            "fc_w": normal(lk[2], (H, inner)),         # mlp.c_fc
            "fc_b": jnp.zeros((1, inner), jnp.float32),
            "mlp_proj_w": normal(lk[3], (inner, H)),   # mlp.c_proj
            "mlp_proj_b": jnp.zeros((1, H), jnp.float32),
        })
    return params


if __name__ == "__main__":
    config = dict(
        vocab_size=64,
        hidden_size=32,
        num_attention_heads=4,
        num_hidden_layers=2,
        max_position_embeddings=16,
        n_inner=None,
        activation_function="relu",
        layer_norm_epsilon=1e-5,
        scale_attn_weights=True,
        attn_pdrop=0.0,
        resid_pdrop=0.0,
        embd_pdrop=0.0,
    )

    key = jax.random.PRNGKey(0)
    pk, ik, lk = jax.random.split(key, 3)
    params = init_params(pk, config)

    B, S = 2, 8
    PAD_ID = 0
    input_ids = jax.random.randint(ik, (B, S), 0, config["vocab_size"], dtype=jnp.int32)
    labels = jax.random.randint(lk, (B, S), 0, config["vocab_size"], dtype=jnp.int32)

    out = lm_head_forward(params, input_ids, labels=labels, PAD_ID=PAD_ID, config=config)
    jax.block_until_ready(out["logits"])
    jax.block_until_ready(out["loss"])
    assert out["logits"].shape == (B, S, config["vocab_size"])
    assert out["attentions"][0].shape == (B, config["num_attention_heads"], S, S)
    print("KERNEL_OK")
</pallas_src>

<mosaic_0001>
module attributes {stable_mosaic.version = 11 : i64} {
  func.func @_layernorm_kernel(%arg0: i32, %arg1: memref<16x32xbf16, #tpu.memory_space<vmem>>, %arg2: memref<1x32xf32, #tpu.memory_space<vmem>>, %arg3: memref<1x32xf32, #tpu.memory_space<vmem>>, %arg4: memref<16x32xbf16, #tpu.memory_space<vmem>>) attributes {dimension_semantics = [#tpu.dimension_semantics<parallel>], iteration_bounds = array<i64: 1>, scalar_prefetch = 0 : i64, scratch_operands = 0 : i64, tpu.core_type = #tpu.core_type<tc>, window_params = [{transform_indices = @transform_0, window_bounds = array<i64: 16, 32>}, {pipeline_mode = #tpu.pipeline_mode<synchronous>, transform_indices = @transform_1, window_bounds = array<i64: 1, 32>}, {pipeline_mode = #tpu.pipeline_mode<synchronous>, transform_indices = @transform_2, window_bounds = array<i64: 1, 32>}, {transform_indices = @transform_3, window_bounds = array<i64: 16, 32>}]} {
    %c0 = arith.constant 0 : index
    %c0_0 = arith.constant 0 : index
    %0 = vector.load %arg1[%c0, %c0_0] : memref<16x32xbf16, #tpu.memory_space<vmem>>, vector<16x32xbf16>
    %1 = arith.extf %0 : vector<16x32xbf16> to vector<16x32xf32>
    %cst = arith.constant dense<0.000000e+00> : vector<16xf32>
    %2 = vector.multi_reduction <add>, %1, %cst [1] : vector<16x32xf32> to vector<16xf32>
    %3 = vector.shape_cast %2 : vector<16xf32> to vector<16x1xf32>
    %cst_1 = arith.constant 3.200000e+01 : f32
    %4 = vector.broadcast %cst_1 : f32 to vector<16x1xf32>
    %5 = arith.divf %3, %4 : vector<16x1xf32>
    %6 = vector.broadcast %5 : vector<16x1xf32> to vector<16x32xf32>
    %7 = arith.subf %1, %6 : vector<16x32xf32>
    %8 = arith.mulf %7, %7 : vector<16x32xf32>
    %cst_2 = arith.constant dense<0.000000e+00> : vector<16xf32>
    %9 = vector.multi_reduction <add>, %8, %cst_2 [1] : vector<16x32xf32> to vector<16xf32>
    %10 = vector.shape_cast %9 : vector<16xf32> to vector<16x1xf32>
    %cst_3 = arith.constant 3.200000e+01 : f32
    %11 = vector.broadcast %cst_3 : f32 to vector<16x1xf32>
    %12 = arith.divf %10, %11 : vector<16x1xf32>
    %13 = vector.broadcast %5 : vector<16x1xf32> to vector<16x32xf32>
    %14 = arith.subf %1, %13 : vector<16x32xf32>
    %cst_4 = arith.constant 9.99999974E-6 : f32
    %15 = vector.broadcast %cst_4 : f32 to vector<16x1xf32>
    %16 = arith.addf %12, %15 : vector<16x1xf32>
    %17 = math.rsqrt %16 : vector<16x1xf32>
    %18 = vector.broadcast %17 : vector<16x1xf32> to vector<16x32xf32>
    %19 = arith.mulf %14, %18 : vector<16x32xf32>
    %c0_5 = arith.constant 0 : index
    %c0_6 = arith.constant 0 : index
    %20 = vector.load %arg2[%c0_5, %c0_6] : memref<1x32xf32, #tpu.memory_space<vmem>>, vector<1x32xf32>
    %21 = vector.broadcast %20 : vector<1x32xf32> to vector<16x32xf32>
    %22 = arith.mulf %19, %21 : vector<16x32xf32>
    %c0_7 = arith.constant 0 : index
    %c0_8 = arith.constant 0 : index
    %23 = vector.load %arg3[%c0_7, %c0_8] : memref<1x32xf32, #tpu.memory_space<vmem>>, vector<1x32xf32>
    %24 = vector.broadcast %23 : vector<1x32xf32> to vector<16x32xf32>
    %25 = arith.addf %22, %24 : vector<16x32xf32>
    %26 = arith.truncf %25 : vector<16x32xf32> to vector<16x32xbf16>
    %c0_9 = arith.constant 0 : index
    %c0_10 = arith.constant 0 : index
    %27 = vector.load %arg4[%c0_9, %c0_10] : memref<16x32xbf16, #tpu.memory_space<vmem>>, vector<16x32xbf16>
    tpu.vector_store %arg4[%c0_9, %c0_10], %26 {strides = array<i32>} : memref<16x32xbf16, #tpu.memory_space<vmem>>, vector<16x32xbf16>,
    return
  }
  func.func @transform_0(%arg0: i32) -> (i32, i32) {
    %c0_i32 = arith.constant 0 : i32
    %c0_i32_0 = arith.constant 0 : i32
    return %arg0, %c0_i32 : i32, i32
  }
  func.func @transform_1(%arg0: i32) -> (i32, i32) {
    %c0_i32 = arith.constant 0 : i32
    %c0_i32_0 = arith.constant 0 : i32
    %c0_i32_1 = arith.constant 0 : i32
    return %c0_i32, %c0_i32_0 : i32, i32
  }
  func.func @transform_2(%arg0: i32) -> (i32, i32) {
    %c0_i32 = arith.constant 0 : i32
    %c0_i32_0 = arith.constant 0 : i32
    %c0_i32_1 = arith.constant 0 : i32
    return %c0_i32, %c0_i32_0 : i32, i32
  }
  func.func @transform_3(%arg0: i32) -> (i32, i32) {
    %c0_i32 = arith.constant 0 : i32
    %c0_i32_0 = arith.constant 0 : i32
    return %arg0, %c0_i32 : i32, i32
  }
}

</mosaic_0001>

<llo_original>
// kernel: tpu_custom_call.1
$region0: #{tpu_custom_call.1}
  #allocation0 [shape = 'u32[]', space=smem, size = 0x4, offset = 0x4, fixed_abs, tag = 'smem constant byte address 0x4 - core index']
  #allocation1 [shape = 'u32[144,128]{1,0:T(1,128)}', space=vmem, size = 0x12000, scoped, tag = 'internal scratch']
  %s0 = inlined_call_operand.hbm [shape: bf16[16,32], index: 0, kind: input, shape index: {}]
  %s1 = inlined_call_operand.vmem [shape: f32[1,32], index: 1, kind: input, shape index: {}]
  %s2 = inlined_call_operand.vmem [shape: f32[1,32], index: 2, kind: input, shape index: {}]
  %s3 = inlined_call_operand.hbm [shape: bf16[16,32], index: 3, kind: output, shape index: {}]
  %s4 = sld [smem:[#allocation0]]
  $region26: #{tpu_custom_call.1} parent=0
    _
  %s6 = ssub.s32 1, %s4
  %s7 = scalar_select 0, %s6, %s4
  $region1: #{tpu_custom_call.1} parent=0
    #allocation2 [shape = 'u8[4096]{0}', space=vmem, size = 0x1000, scoped, tag = 'input window, operand 0, single buffered']
    #allocation3 [shape = 's32[1]{0}', space=sflag, size = 0x4, scoped, tag = 'scoped memory for tpu_custom_call.1']
    #allocation4 [shape = 's32[1]{0}', space=sflag, size = 0x4, scoped, tag = 'scoped memory for tpu_custom_call.1']
    #allocation5 [shape = 'u8[4096]{0}', space=vmem, size = 0x1000, scoped, tag = 'output window, operand 0, single buffered']
    %8 = vsyncpa [#allocation3], 0
    %9 = vsyncpa [#allocation4], 0
    // Predicated region
    $region2: #{tpu_custom_call.1} parent=1 // pred_check
      _
    $region3: #{tpu_custom_call.1} parent=1 // pred_check_branch
      %11 = sbr.rel (0) target = $region5
    $region4: #{tpu_custom_call.1} parent=1 // pred_region
      %s13 = ssub.s32 128, 128
      %14 = vsyncadd [#allocation3], %s13
      %s15 = sshll.u32 [#allocation2], 4
      %s16 = int_to_ptr.vmem [resolvable:$true] %s15
      %21 = dma.hbm_to_vmem [thread:$0]  %s0, 128, %s16, [#allocation3], 64, 64, 4
    $region5: #{tpu_custom_call.1} parent=1 // pred_fallthru
      _
    // Predicated region
    $region6: #{tpu_custom_call.1} parent=1 // pred_check
      _
    $region7: #{tpu_custom_call.1} parent=1 // pred_check_branch
      %23 = sbr.rel (0) target = $region9
    $region8: #{tpu_custom_call.1} parent=1 // pred_region
      _
    $region9: #{tpu_custom_call.1} parent=1 // pred_fallthru
      _
    // Predicated region
    $region10: #{tpu_custom_call.1} parent=1 // pred_check
      _
    $region11: #{tpu_custom_call.1} parent=1 // pred_check_branch
      %25 = sbr.rel (0) target = $region13
    $region12: #{tpu_custom_call.1} parent=1 // pred_region
      _
    $region13: #{tpu_custom_call.1} parent=1 // pred_fallthru
      _
    // Predicated region
    $region14: #{tpu_custom_call.1} parent=1 // pred_check
      _
    $region15: #{tpu_custom_call.1} parent=1 // pred_check_branch
      %27 = sbr.rel (0) target = $region17
    $region16: #{tpu_custom_call.1} parent=1 // pred_region
      %28 = dma.done [#allocation3], 128
    $region17: #{tpu_custom_call.1} parent=1 // pred_fallthru
      _
    %v29 = vld [vmem:[#allocation2] sm:$0xf]
    %v30 = vld [vmem:[#allocation2 + $0x4] sm:$0xf]
    %v31 = vunpack.c.l.bf16 %v29
    %v32 = vunpack.c.l.bf16 %v30
    %vm33 = vcmask 261120
    %v34 = vsel %vm33, %v31, 0.0
    %35 = vadd.xlane.f32.xlu0 %v34
    %v36 = vpop.xlane.xlu0 %35
    %v37 = vsel %vm33, %v32, 0.0
    %38 = vadd.xlane.f32.xlu0 %v37
    %v39 = vpop.xlane.xlu0 %38
    %v40 = vrcp.pop 32.0
    %v41 = vmul.f32 %v36, %v40
    %v42 = vmul.f32 %v39, %v40
    %v43 = vsub.f32 %v31, %v41
    %v44 = vsub.f32 %v32, %v42
    %v45 = vmul.f32 %v43, %v43
    %v46 = vmul.f32 %v44, %v44
    %v47 = vsel %vm33, %v45, 0.0
    %48 = vadd.xlane.f32.xlu0 %v47
    %v49 = vpop.xlane.xlu0 %48
    %v50 = vsel %vm33, %v46, 0.0
    %51 = vadd.xlane.f32.xlu0 %v50
    %v52 = vpop.xlane.xlu0 %51
    %v53 = vmul.f32 %v49, %v40
    %v54 = vmul.f32 %v52, %v40
    %v55 = vadd.f32 %v53, 1e-05
    %v56 = vadd.f32 %v54, 1e-05
    %v57 = vrsqrt.pop %v55
    %v58 = vrsqrt.pop %v56
    %v59 = vmul.f32 %v43, %v57
    %v60 = vmul.f32 %v44, %v58
    %v61 = vld [vmem:[%s1] sm:$0x1]
    %v63 = vlaneseq
    %v64 = vshrl.u32 %v63, 7
    %v65 = vsub.s32 0, %v64
    %v66 = vrot.slane %v61, %v65
    %v68 = vmul.f32 %v59, %v66
    %v69 = vmul.f32 %v60, %v66
    %v70 = vld [vmem:[%s2] sm:$0x1]
    %v72 = vlaneseq
    %v73 = vshrl.u32 %v72, 7
    %v74 = vsub.s32 0, %v73
    %v75 = vrot.slane %v70, %v74
    %v77 = vadd.f32 %v68, %v75
    %v78 = vadd.f32 %v69, %v75
    %v79 = vpack.c.bf16 %v78, %v77
    %v81 = vunpack.c.l.b16 %v79
    %v82 = vunpack.c.h.b16 %v79
    %v83 = vpack.c.b16 %v81, %v81
    %v84 = vpack.c.b16 %v82, %v82
    %vm87 = vcmask 257024
    %88 = vst.msk [vmem:[#allocation5] sm:$0xf] %vm87, %v83
    %89 = vst.msk [vmem:[#allocation5 + $0x4] sm:$0xf] %vm87, %v84
    // Predicated region
    $region18: #{tpu_custom_call.1} parent=1 // pred_check
      _
    $region19: #{tpu_custom_call.1} parent=1 // pred_check_branch
      %91 = sbr.rel (0) target = $region21
    $region20: #{tpu_custom_call.1} parent=1 // pred_region
      %s93 = ssub.s32 128, 128
      %94 = vsyncadd [#allocation4], %s93
      %s95 = sshll.u32 [#allocation5], 4
      %s96 = int_to_ptr.vmem [resolvable:$true] %s95
      %101 = dma.vmem_to_hbm [thread:$0]  %s96, 128, %s3, [#allocation4], 64, 64, 4
    $region21: #{tpu_custom_call.1} parent=1 // pred_fallthru
      _
    // Predicated region
    $region22: #{tpu_custom_call.1} parent=1 // pred_check
      _
    $region23: #{tpu_custom_call.1} parent=1 // pred_check_branch
      %103 = sbr.rel (0) target = $region25
    $region24: #{tpu_custom_call.1} parent=1 // pred_region
      %104 = dma.done [#allocation4], 128
    $region25: #{tpu_custom_call.1} parent=1 // pred_fallthru
      _
    %105 = vsyncpa [#allocation3], 1
    %106 = vsyncpa [#allocation4], 1

</llo_original>
